<compile_context>
chip_gen: v6e
topology: v6e:2x2x1
jax: 0.10.0
libtpu: 0.0.40
codegen_flags: <defaults>
</compile_context>

<pallas_src>
import jax
import jax.numpy as jnp
from jax.experimental import pallas as pl
from jax.experimental.pallas import tpu as pltpu

EMBEDDING_DIM = 20
HIDDEN_LAYERS = [64, 32]


def _round_up(x, m):
    return (x + m - 1) // m * m


def _ceil_div(a, b):
    return -(-a // b)


def ncf_kernel(u_ref, i_ref, w0u_ref, w0i_ref, b0_ref, w1_ref, b1_ref,
               wfg_ref, wfm_ref, bf_ref, out_ref):
    """All activations are feature-major: (features, tile_batch)."""
    f32 = jnp.float32

    u = u_ref[...]                                   # (2E, T) bf16 packed [gmf|mlp]
    i = i_ref[...]                                   # (2E, T) bf16 packed [gmf|mlp]

    # GMF branch: elementwise product on the VPU; the MLP half of the packed
    # rows is masked out by the zero rows of wfg_col in the final reduction.
    prod = u.astype(f32) * i.astype(f32)             # (2E, T)
    gmf_contrib = jnp.sum(prod * wfg_ref[...], axis=0, keepdims=True)   # (1, T)

    # MLP tower.  W0 is stored transposed + zero-padded over the packed rows,
    # so concat([ue_mlp, ie_mlp]) @ W0 == W0u_t @ u + W0i_t @ i (no concat,
    # no slicing).  MXU matmuls, f32 accumulation.
    h0 = (jnp.dot(w0u_ref[...], u, preferred_element_type=f32)
          + jnp.dot(w0i_ref[...], i, preferred_element_type=f32)
          + b0_ref[...])                             # (H0, T)
    h0 = jnp.maximum(h0, 0.0)
    h1 = (jnp.dot(w1_ref[...], h0.astype(w1_ref.dtype),
                  preferred_element_type=f32)
          + b1_ref[...])                             # (H1, T)
    h1 = jnp.maximum(h1, 0.0)

    # Final Linear (width 1) as cross-sublane reductions (MXU stays free),
    # producing a lane-dense (1, T) row directly -> unmasked stores.
    mlp_contrib = jnp.sum(h1 * wfm_ref[...], axis=0, keepdims=True)     # (1, T)
    logit = gmf_contrib + mlp_contrib + bf_ref[0, 0]                    # (1, T)
    out_ref[...] = 1.0 / (1.0 + jnp.exp(-logit))


def init_params(key, num_users, num_items, embedding_dim=EMBEDDING_DIM,
                hidden_layers=HIDDEN_LAYERS,
                emb_dtype=jnp.bfloat16, w_dtype=jnp.bfloat16):
    E = embedding_dim
    H0, H1 = hidden_layers
    ks = jax.random.split(key, 10)
    p = {}

    # Embedding tables (PyTorch default init: N(0, 1)).  Packed per entity
    # ([gmf | mlp], width 2E) and stored transposed (2E, num_ids) so the XLA
    # gather directly yields the kernel's feature-major layout.
    def emb(k, n):
        return jax.random.normal(k, (n, E), jnp.float32)

    user_tab = jnp.concatenate([emb(ks[0], num_users), emb(ks[2], num_users)], axis=1)
    item_tab = jnp.concatenate([emb(ks[1], num_items), emb(ks[3], num_items)], axis=1)
    p["user_table_t"] = user_tab.T.astype(emb_dtype)          # (2E, num_users)
    p["item_table_t"] = item_tab.T.astype(emb_dtype)          # (2E, num_items)

    def linear_init(kw, kb, fan_in, fan_out):
        bound = 1.0 / (fan_in ** 0.5)
        w = jax.random.uniform(kw, (fan_in, fan_out), jnp.float32, -bound, bound)
        b = jax.random.uniform(kb, (fan_out,), jnp.float32, -bound, bound)
        return w, b

    # linear_0 : (2E -> H0).  Stored transposed and zero-padded over the packed
    # 2E embedding rows (GMF columns get zero weights).
    w0, b0 = linear_init(ks[4], ks[5], 2 * E, H0)
    zpad = jnp.zeros((H0, E), jnp.float32)
    p["w0u_t"] = jnp.concatenate([zpad, w0[:E].T], axis=1).astype(w_dtype)   # (H0, 2E)
    p["w0i_t"] = jnp.concatenate([zpad, w0[E:].T], axis=1).astype(w_dtype)   # (H0, 2E)
    p["b0_col"] = b0[:, None]                                                # (H0, 1)

    # linear_1 : (H0 -> H1)
    w1, b1 = linear_init(ks[6], ks[7], H0, H1)
    p["w1_t"] = w1.T.astype(w_dtype)                                         # (H1, H0)
    p["b1_col"] = b1[:, None]                                                # (H1, 1)

    # final_linear : (E + H1 -> 1), split to match concat order [gmf, mlp].
    # GMF weights are zero-padded to the packed width 2E; kept f32 as column
    # vectors for the in-kernel sublane reductions.
    fan_in_final = E + H1
    bound = 1.0 / (fan_in_final ** 0.5)
    wf = jax.random.uniform(ks[8], (fan_in_final, 1), jnp.float32, -bound, bound)
    p["wfg_col"] = jnp.concatenate([wf[:E], jnp.zeros((E, 1), jnp.float32)], axis=0)
    p["wfm_col"] = wf[E:]                                                    # (H1, 1)
    p["bf"] = jax.random.uniform(ks[9], (1, 1), jnp.float32, -bound, bound)
    return p


def ncf_forward(x, params, tile_b=8192):
    # x: (B, 2) int32, columns = [user_id, item_id]
    user_id = x[:, 0]
    item_id = x[:, 1]
    B = x.shape[0]

    # --- batch tile / grid selection -------------------------------------
    # Large lane-aligned tiles amortize the per-grid-step overhead; re-derive
    # the tile from B (instead of padding to a full tile_b) to limit tail
    # padding, and force >=2 steps for moderate batches so v7x can shard the
    # parallel batch axis across both TensorCores.
    num_steps = max(1, _ceil_div(B, tile_b))
    if num_steps == 1 and B >= 256:
        num_steps = 2
    tile = _round_up(_ceil_div(B, num_steps), 128)
    Bp = tile * num_steps
    if Bp != B:
        pad = Bp - B
        user_id = jnp.pad(user_id, (0, pad))
        item_id = jnp.pad(item_id, (0, pad))

    # Embedding gathers stay in XLA (data-dependent row lookups).  Gathering
    # from the pre-transposed packed tables yields the (2E, Bp) feature-major
    # layout the kernel consumes, with no extra transpose pass over HBM.
    # TODO(synk): for catalogs small enough to be VMEM-resident, gather
    # in-kernel from resident tables to avoid this HBM round trip entirely.
    u_t = jnp.take(params["user_table_t"], user_id, axis=1)   # (2E, Bp) bf16
    i_t = jnp.take(params["item_table_t"], item_id, axis=1)   # (2E, Bp) bf16

    PACK = u_t.shape[0]                 # 2E
    H0 = params["w0u_t"].shape[0]
    H1 = params["w1_t"].shape[0]

    pack_spec = pl.BlockSpec((PACK, tile), lambda i: (0, i))   # batch-tiled inputs

    def resident(shape):                                       # weights stay put
        return pl.BlockSpec(shape, lambda i: (0, 0))

    out = pl.pallas_call(
        ncf_kernel,
        out_shape=jax.ShapeDtypeStruct((1, Bp), jnp.float32),  # lane-dense output
        grid=(num_steps,),
        in_specs=[
            pack_spec, pack_spec,                              # gathered embeddings
            resident((H0, PACK)), resident((H0, PACK)), resident((H0, 1)),
            resident((H1, H0)), resident((H1, 1)),
            resident((PACK, 1)), resident((H1, 1)),
            pl.BlockSpec((1, 1), lambda i: (0, 0),
                         memory_space=pltpu.MemorySpace.SMEM),  # scalar final bias
        ],
        out_specs=pl.BlockSpec((1, tile), lambda i: (0, i)),
        compiler_params=pltpu.CompilerParams(
            dimension_semantics=("parallel",),
            vmem_limit_bytes=32 * 1024 * 1024),
    )(u_t, i_t,
      params["w0u_t"], params["w0i_t"], params["b0_col"],
      params["w1_t"], params["b1_col"],
      params["wfg_col"], params["wfm_col"], params["bf"])

    # Matches torch .squeeze() for B > 1 (for B == 1 torch returns a 0-d scalar).
    return out[0, :B]


def ncf_reference(x, p):
    """Pure-JAX reference mirroring the kernel's packed layout & mixed precision."""
    f32 = jnp.float32
    u = p["user_table_t"][:, x[:, 0]]                 # (2E, B) bf16
    i = p["item_table_t"][:, x[:, 1]]                 # (2E, B) bf16
    prod = u.astype(f32) * i.astype(f32)
    gmf_c = jnp.sum(prod * p["wfg_col"], axis=0)
    h0 = jnp.maximum(jnp.dot(p["w0u_t"], u, preferred_element_type=f32)
                     + jnp.dot(p["w0i_t"], i, preferred_element_type=f32)
                     + p["b0_col"], 0.0)
    h1 = jnp.maximum(jnp.dot(p["w1_t"], h0.astype(p["w1_t"].dtype),
                             preferred_element_type=f32)
                     + p["b1_col"], 0.0)
    mlp_c = jnp.sum(h1 * p["wfm_col"], axis=0)
    logit = gmf_c + mlp_c + p["bf"][0, 0]
    return 1.0 / (1.0 + jnp.exp(-logit))              # (B,)


if __name__ == "__main__":
    key = jax.random.PRNGKey(0)
    k_param, k_u, k_i = jax.random.split(key, 3)

    num_users, num_items = 11, 13
    params = init_params(k_param, num_users, num_items, EMBEDDING_DIM, HIDDEN_LAYERS)

    fwd = jax.jit(ncf_forward)

    # Small batch (single grid step, padded up to one lane-aligned tile).
    batch = 8
    users = jax.random.randint(k_u, (batch, 1), 0, num_users, dtype=jnp.int32)
    items = jax.random.randint(k_i, (batch, 1), 0, num_items, dtype=jnp.int32)
    x = jnp.concatenate([users, items], axis=1)          # (B, 2) int32

    pred = jax.block_until_ready(fwd(x, params))
    ref = jax.block_until_ready(ncf_reference(x, params))
    assert pred.shape == (batch,), pred.shape
    assert jnp.allclose(pred, ref, atol=1e-4, rtol=1e-4), (pred, ref)

    # Larger batch: exercises the multi-step grid, tail padding and pipelining.
    batch2 = 2500
    users2 = jax.random.randint(k_u, (batch2,), 0, num_users, dtype=jnp.int32)
    items2 = jax.random.randint(k_i, (batch2,), 0, num_items, dtype=jnp.int32)
    x2 = jnp.stack([users2, items2], axis=1)             # (B2, 2) int32

    pred2 = jax.block_until_ready(fwd(x2, params))
    ref2 = jax.block_until_ready(ncf_reference(x2, params))
    assert pred2.shape == (batch2,), pred2.shape
    assert jnp.allclose(pred2, ref2, atol=1e-4, rtol=1e-4)

    print("KERNEL_OK")
</pallas_src>

<mosaic_0001>
module attributes {stable_mosaic.version = 11 : i64} {
  func.func @ncf_kernel(%arg0: i32, %arg1: memref<40x128xbf16, #tpu.memory_space<vmem>>, %arg2: memref<40x128xbf16, #tpu.memory_space<vmem>>, %arg3: memref<64x40xbf16, #tpu.memory_space<vmem>>, %arg4: memref<64x40xbf16, #tpu.memory_space<vmem>>, %arg5: memref<64x1xf32, #tpu.memory_space<vmem>>, %arg6: memref<32x64xbf16, #tpu.memory_space<vmem>>, %arg7: memref<32x1xf32, #tpu.memory_space<vmem>>, %arg8: memref<40x1xf32, #tpu.memory_space<vmem>>, %arg9: memref<32x1xf32, #tpu.memory_space<vmem>>, %arg10: memref<1x1xf32, #tpu.memory_space<smem>>, %arg11: memref<1x128xf32, #tpu.memory_space<vmem>>) attributes {dimension_semantics = [#tpu.dimension_semantics<parallel>], iteration_bounds = array<i64: 1>, scalar_prefetch = 0 : i64, scratch_operands = 0 : i64, tpu.core_type = #tpu.core_type<tc>, window_params = [{transform_indices = @transform_0, window_bounds = array<i64: 40, 128>}, {transform_indices = @transform_1, window_bounds = array<i64: 40, 128>}, {pipeline_mode = #tpu.pipeline_mode<synchronous>, transform_indices = @transform_2, window_bounds = array<i64: 64, 40>}, {pipeline_mode = #tpu.pipeline_mode<synchronous>, transform_indices = @transform_3, window_bounds = array<i64: 64, 40>}, {pipeline_mode = #tpu.pipeline_mode<synchronous>, transform_indices = @transform_4, window_bounds = array<i64: 64, 1>}, {pipeline_mode = #tpu.pipeline_mode<synchronous>, transform_indices = @transform_5, window_bounds = array<i64: 32, 64>}, {pipeline_mode = #tpu.pipeline_mode<synchronous>, transform_indices = @transform_6, window_bounds = array<i64: 32, 1>}, {pipeline_mode = #tpu.pipeline_mode<synchronous>, transform_indices = @transform_7, window_bounds = array<i64: 40, 1>}, {pipeline_mode = #tpu.pipeline_mode<synchronous>, transform_indices = @transform_8, window_bounds = array<i64: 32, 1>}, {transform_indices = @transform_9, window_bounds = array<i64: 1, 1>}, {transform_indices = @transform_10, window_bounds = array<i64: 1, 128>}]} {
    %c0 = arith.constant 0 : index
    %c0_0 = arith.constant 0 : index
    %0 = vector.load %arg1[%c0, %c0_0] : memref<40x128xbf16, #tpu.memory_space<vmem>>, vector<40x128xbf16>
    %c0_1 = arith.constant 0 : index
    %c0_2 = arith.constant 0 : index
    %1 = vector.load %arg2[%c0_1, %c0_2] : memref<40x128xbf16, #tpu.memory_space<vmem>>, vector<40x128xbf16>
    %2 = arith.extf %0 : vector<40x128xbf16> to vector<40x128xf32>
    %3 = arith.extf %1 : vector<40x128xbf16> to vector<40x128xf32>
    %4 = arith.mulf %2, %3 : vector<40x128xf32>
    %c0_3 = arith.constant 0 : index
    %c0_4 = arith.constant 0 : index
    %5 = vector.load %arg8[%c0_3, %c0_4] : memref<40x1xf32, #tpu.memory_space<vmem>>, vector<40x1xf32>
    %6 = vector.broadcast %5 : vector<40x1xf32> to vector<40x128xf32>
    %7 = arith.mulf %4, %6 : vector<40x128xf32>
    %cst = arith.constant dense<0.000000e+00> : vector<128xf32>
    %8 = vector.multi_reduction <add>, %7, %cst [0] : vector<40x128xf32> to vector<128xf32>
    %9 = vector.shape_cast %8 : vector<128xf32> to vector<1x128xf32>
    %c0_5 = arith.constant 0 : index
    %c0_6 = arith.constant 0 : index
    %10 = vector.load %arg3[%c0_5, %c0_6] : memref<64x40xbf16, #tpu.memory_space<vmem>>, vector<64x40xbf16>
    %cst_7 = arith.constant dense<0.000000e+00> : vector<64x128xf32>
    %11 = tpu.matmul %10, %0, %cst_7 {dimension_numbers = #tpu.dot_dimension_numbers<[1], [0], [0], [1], [0, 0, 1, 1], [], []>} : vector<64x40xbf16>, vector<40x128xbf16>, vector<64x128xf32> -> vector<64x128xf32>
    %c0_8 = arith.constant 0 : index
    %c0_9 = arith.constant 0 : index
    %12 = vector.load %arg4[%c0_8, %c0_9] : memref<64x40xbf16, #tpu.memory_space<vmem>>, vector<64x40xbf16>
    %cst_10 = arith.constant dense<0.000000e+00> : vector<64x128xf32>
    %13 = tpu.matmul %12, %1, %cst_10 {dimension_numbers = #tpu.dot_dimension_numbers<[1], [0], [0], [1], [0, 0, 1, 1], [], []>} : vector<64x40xbf16>, vector<40x128xbf16>, vector<64x128xf32> -> vector<64x128xf32>
    %14 = arith.addf %11, %13 : vector<64x128xf32>
    %c0_11 = arith.constant 0 : index
    %c0_12 = arith.constant 0 : index
    %15 = vector.load %arg5[%c0_11, %c0_12] : memref<64x1xf32, #tpu.memory_space<vmem>>, vector<64x1xf32>
    %16 = vector.broadcast %15 : vector<64x1xf32> to vector<64x128xf32>
    %17 = arith.addf %14, %16 : vector<64x128xf32>
    %cst_13 = arith.constant 0.000000e+00 : f32
    %18 = vector.broadcast %cst_13 : f32 to vector<64x128xf32>
    %19 = arith.maximumf %17, %18 : vector<64x128xf32>
    %c0_14 = arith.constant 0 : index
    %c0_15 = arith.constant 0 : index
    %20 = vector.load %arg6[%c0_14, %c0_15] : memref<32x64xbf16, #tpu.memory_space<vmem>>, vector<32x64xbf16>
    %21 = arith.truncf %19 : vector<64x128xf32> to vector<64x128xbf16>
    %cst_16 = arith.constant dense<0.000000e+00> : vector<32x128xf32>
    %22 = tpu.matmul %20, %21, %cst_16 {dimension_numbers = #tpu.dot_dimension_numbers<[1], [0], [0], [1], [0, 0, 1, 1], [], []>} : vector<32x64xbf16>, vector<64x128xbf16>, vector<32x128xf32> -> vector<32x128xf32>
    %c0_17 = arith.constant 0 : index
    %c0_18 = arith.constant 0 : index
    %23 = vector.load %arg7[%c0_17, %c0_18] : memref<32x1xf32, #tpu.memory_space<vmem>>, vector<32x1xf32>
    %24 = vector.broadcast %23 : vector<32x1xf32> to vector<32x128xf32>
    %25 = arith.addf %22, %24 : vector<32x128xf32>
    %cst_19 = arith.constant 0.000000e+00 : f32
    %26 = vector.broadcast %cst_19 : f32 to vector<32x128xf32>
    %27 = arith.maximumf %25, %26 : vector<32x128xf32>
    %c0_20 = arith.constant 0 : index
    %c0_21 = arith.constant 0 : index
    %28 = vector.load %arg9[%c0_20, %c0_21] : memref<32x1xf32, #tpu.memory_space<vmem>>, vector<32x1xf32>
    %29 = vector.broadcast %28 : vector<32x1xf32> to vector<32x128xf32>
    %30 = arith.mulf %27, %29 : vector<32x128xf32>
    %cst_22 = arith.constant dense<0.000000e+00> : vector<128xf32>
    %31 = vector.multi_reduction <add>, %30, %cst_22 [0] : vector<32x128xf32> to vector<128xf32>
    %32 = vector.shape_cast %31 : vector<128xf32> to vector<1x128xf32>
    %33 = arith.addf %9, %32 : vector<1x128xf32>
    %c0_23 = arith.constant 0 : index
    %c0_24 = arith.constant 0 : index
    %34 = memref.load %arg10[%c0_23, %c0_24] : memref<1x1xf32, #tpu.memory_space<smem>>
    %35 = vector.broadcast %34 : f32 to vector<1x128xf32>
    %36 = arith.addf %33, %35 : vector<1x128xf32>
    %cst_25 = arith.constant 0.000000e+00 : f32
    %37 = vector.broadcast %cst_25 : f32 to vector<1x128xf32>
    %38 = arith.subf %37, %36 : vector<1x128xf32>
    %39 = math.exp %38 : vector<1x128xf32>
    %cst_26 = arith.constant 1.000000e+00 : f32
    %40 = vector.broadcast %cst_26 : f32 to vector<1x128xf32>
    %41 = arith.addf %40, %39 : vector<1x128xf32>
    %cst_27 = arith.constant 1.000000e+00 : f32
    %42 = vector.broadcast %cst_27 : f32 to vector<1x128xf32>
    %43 = arith.divf %42, %41 : vector<1x128xf32>
    %c0_28 = arith.constant 0 : index
    %c0_29 = arith.constant 0 : index
    %44 = vector.load %arg11[%c0_28, %c0_29] : memref<1x128xf32, #tpu.memory_space<vmem>>, vector<1x128xf32>
    tpu.vector_store %arg11[%c0_28, %c0_29], %43 {strides = array<i32>} : memref<1x128xf32, #tpu.memory_space<vmem>>, vector<1x128xf32>,
    return
  }
  func.func @transform_0(%arg0: i32) -> (i32, i32) {
    %c0_i32 = arith.constant 0 : i32
    %c0_i32_0 = arith.constant 0 : i32
    return %c0_i32, %arg0 : i32, i32
  }
  func.func @transform_1(%arg0: i32) -> (i32, i32) {
    %c0_i32 = arith.constant 0 : i32
    %c0_i32_0 = arith.constant 0 : i32
    return %c0_i32, %arg0 : i32, i32
  }
  func.func @transform_2(%arg0: i32) -> (i32, i32) {
    %c0_i32 = arith.constant 0 : i32
    %c0_i32_0 = arith.constant 0 : i32
    %c0_i32_1 = arith.constant 0 : i32
    return %c0_i32, %c0_i32_0 : i32, i32
  }
  func.func @transform_3(%arg0: i32) -> (i32, i32) {
    %c0_i32 = arith.constant 0 : i32
    %c0_i32_0 = arith.constant 0 : i32
    %c0_i32_1 = arith.constant 0 : i32
    return %c0_i32, %c0_i32_0 : i32, i32
  }
  func.func @transform_4(%arg0: i32) -> (i32, i32) {
    %c0_i32 = arith.constant 0 : i32
    %c0_i32_0 = arith.constant 0 : i32
    %c0_i32_1 = arith.constant 0 : i32
    return %c0_i32, %c0_i32_0 : i32, i32
  }
  func.func @transform_5(%arg0: i32) -> (i32, i32) {
    %c0_i32 = arith.constant 0 : i32
    %c0_i32_0 = arith.constant 0 : i32
    %c0_i32_1 = arith.constant 0 : i32
    return %c0_i32, %c0_i32_0 : i32, i32
  }
  func.func @transform_6(%arg0: i32) -> (i32, i32) {
    %c0_i32 = arith.constant 0 : i32
    %c0_i32_0 = arith.constant 0 : i32
    %c0_i32_1 = arith.constant 0 : i32
    return %c0_i32, %c0_i32_0 : i32, i32
  }
  func.func @transform_7(%arg0: i32) -> (i32, i32) {
    %c0_i32 = arith.constant 0 : i32
    %c0_i32_0 = arith.constant 0 : i32
    %c0_i32_1 = arith.constant 0 : i32
    return %c0_i32, %c0_i32_0 : i32, i32
  }
  func.func @transform_8(%arg0: i32) -> (i32, i32) {
    %c0_i32 = arith.constant 0 : i32
    %c0_i32_0 = arith.constant 0 : i32
    %c0_i32_1 = arith.constant 0 : i32
    return %c0_i32, %c0_i32_0 : i32, i32
  }
  func.func @transform_9(%arg0: i32) -> (i32, i32) {
    %c0_i32 = arith.constant 0 : i32
    %c0_i32_0 = arith.constant 0 : i32
    %c0_i32_1 = arith.constant 0 : i32
    return %c0_i32, %c0_i32_0 : i32, i32
  }
  func.func @transform_10(%arg0: i32) -> (i32, i32) {
    %c0_i32 = arith.constant 0 : i32
    %c0_i32_0 = arith.constant 0 : i32
    return %c0_i32, %arg0 : i32, i32
  }
}

</mosaic_0001>

<llo_original>
// kernel: ncf_forward.1
$region0: #{ncf_forward.1}
  #allocation0 [shape = 'u32[]', space=smem, size = 0x4, offset = 0x4, fixed_abs, tag = 'smem constant byte address 0x4 - core index']
  #allocation1 [shape = 'u32[144,128]{1,0:T(1,128)}', space=vmem, size = 0x12000, scoped, tag = 'internal scratch']
  #allocation2 [shape = 'f32[1,1]{1,0:T(1,128)S(6)}', space=smem, size = 0x200, scoped, tag = 'scoped memory for ncf_forward.1']
  %s0 = inlined_call_operand.vmem [shape: bf16[40,128], index: 0, kind: input, shape index: {}]
  %s1 = inlined_call_operand.vmem [shape: bf16[40,128], index: 1, kind: input, shape index: {}]
  %s2 = inlined_call_operand.vmem [shape: bf16[64,40], index: 2, kind: input, shape index: {}]
  %s3 = inlined_call_operand.vmem [shape: bf16[64,40], index: 3, kind: input, shape index: {}]
  %s4 = inlined_call_operand.vmem [shape: f32[64,1], index: 4, kind: input, shape index: {}]
  %s5 = inlined_call_operand.vmem [shape: bf16[32,64], index: 5, kind: input, shape index: {}]
  %s6 = inlined_call_operand.vmem [shape: f32[32,1], index: 6, kind: input, shape index: {}]
  %s7 = inlined_call_operand.vmem [shape: f32[40,1], index: 7, kind: input, shape index: {}]
  %s8 = inlined_call_operand.vmem [shape: f32[32,1], index: 8, kind: input, shape index: {}]
  %s9 = inlined_call_operand.<no memory space> [shape: f32[1,1], index: 9, kind: input, shape index: {}]
  %s10 = inlined_call_operand.vmem [shape: f32[1,128], index: 10, kind: output, shape index: {}]
  %s11 = sld [smem:[#allocation0]]
  $region50: #{ncf_forward.1} parent=0
    _
  %s13 = ssub.s32 1, %s11
  %s14 = scalar_select 0, %s13, %s11
  %15 = sst [smem:[#allocation2]] %s9
  // Predicated region
  $region2: #{ncf_forward.1} parent=0 // pred_check
    _
  $region3: #{ncf_forward.1} parent=0 // pred_check_branch
    %17 = sbr.rel (0) target = $region5
  $region4: #{ncf_forward.1} parent=0 // pred_region
    _
  $region5: #{ncf_forward.1} parent=0 // pred_fallthru
    _
  // Predicated region
  $region6: #{ncf_forward.1} parent=0 // pred_check
    _
  $region7: #{ncf_forward.1} parent=0 // pred_check_branch
    %19 = sbr.rel (0) target = $region9
  $region8: #{ncf_forward.1} parent=0 // pred_region
    _
  $region9: #{ncf_forward.1} parent=0 // pred_fallthru
    _
  // Predicated region
  $region10: #{ncf_forward.1} parent=0 // pred_check
    _
  $region11: #{ncf_forward.1} parent=0 // pred_check_branch
    %21 = sbr.rel (0) target = $region13
  $region12: #{ncf_forward.1} parent=0 // pred_region
    _
  $region13: #{ncf_forward.1} parent=0 // pred_fallthru
    _
  // Predicated region
  $region14: #{ncf_forward.1} parent=0 // pred_check
    _
  $region15: #{ncf_forward.1} parent=0 // pred_check_branch
    %23 = sbr.rel (0) target = $region17
  $region16: #{ncf_forward.1} parent=0 // pred_region
    _
  $region17: #{ncf_forward.1} parent=0 // pred_fallthru
    _
  // Predicated region
  $region18: #{ncf_forward.1} parent=0 // pred_check
    _
  $region19: #{ncf_forward.1} parent=0 // pred_check_branch
    %25 = sbr.rel (0) target = $region21
  $region20: #{ncf_forward.1} parent=0 // pred_region
    _
  $region21: #{ncf_forward.1} parent=0 // pred_fallthru
    _
  // Predicated region
  $region22: #{ncf_forward.1} parent=0 // pred_check
    _
  $region23: #{ncf_forward.1} parent=0 // pred_check_branch
    %27 = sbr.rel (0) target = $region25
  $region24: #{ncf_forward.1} parent=0 // pred_region
    _
  $region25: #{ncf_forward.1} parent=0 // pred_fallthru
    _
  // Predicated region
  $region26: #{ncf_forward.1} parent=0 // pred_check
    _
  $region27: #{ncf_forward.1} parent=0 // pred_check_branch
    %29 = sbr.rel (0) target = $region29
  $region28: #{ncf_forward.1} parent=0 // pred_region
    _
  $region29: #{ncf_forward.1} parent=0 // pred_fallthru
    _
  // Predicated region
  $region30: #{ncf_forward.1} parent=0 // pred_check
    _
  $region31: #{ncf_forward.1} parent=0 // pred_check_branch
    %31 = sbr.rel (0) target = $region33
  $region32: #{ncf_forward.1} parent=0 // pred_region
    _
  $region33: #{ncf_forward.1} parent=0 // pred_fallthru
    _
  // Predicated region
  $region34: #{ncf_forward.1} parent=0 // pred_check
    _
  $region35: #{ncf_forward.1} parent=0 // pred_check_branch
    %33 = sbr.rel (0) target = $region37
  $region36: #{ncf_forward.1} parent=0 // pred_region
    _
  $region37: #{ncf_forward.1} parent=0 // pred_fallthru
    _
  // Predicated region
  $region38: #{ncf_forward.1} parent=0 // pred_check
    _
  $region39: #{ncf_forward.1} parent=0 // pred_check_branch
    %35 = sbr.rel (0) target = $region41
  $region40: #{ncf_forward.1} parent=0 // pred_region
    _
  $region41: #{ncf_forward.1} parent=0 // pred_fallthru
    _
  %v37 = vld [vmem:[%s0] sm:$0xf]
  %v38 = vld [vmem:[%s0 + $0x4] sm:$0xf]
  %v39 = vld [vmem:[%s0 + $0x8] sm:$0xf]
  %v40 = vld [vmem:[%s0 + $0xc] sm:$0xf]
  %v41 = vld [vmem:[%s0 + $0x10] sm:$0xf]
  %v42 = vld [vmem:[%s1] sm:$0xf]
  %v43 = vld [vmem:[%s1 + $0x4] sm:$0xf]
  %v44 = vld [vmem:[%s1 + $0x8] sm:$0xf]
  %v45 = vld [vmem:[%s1 + $0xc] sm:$0xf]
  %v46 = vld [vmem:[%s1 + $0x10] sm:$0xf]
  %v47 = vunpack.c.l.bf16 %v37
  %v48 = vunpack.c.l.bf16 %v38
  %v49 = vunpack.c.l.bf16 %v39
  %v50 = vunpack.c.l.bf16 %v40
  %v51 = vunpack.c.l.bf16 %v41
  %v52 = vunpack.c.l.bf16 %v42
  %v53 = vunpack.c.l.bf16 %v43
  %v54 = vunpack.c.l.bf16 %v44
  %v55 = vunpack.c.l.bf16 %v45
  %v56 = vunpack.c.l.bf16 %v46
  %v57 = vmul.f32 %v47, %v52
  %v58 = vmul.f32 %v48, %v53
  %v59 = vmul.f32 %v49, %v54
  %v60 = vmul.f32 %v50, %v55
  %v61 = vmul.f32 %v51, %v56
  %v62 = vld [vmem:[%s7] sm:$0xff]
  %v63 = vld [vmem:[%s7 + $0x8] sm:$0xff]
  %v64 = vld [vmem:[%s7 + $0x10] sm:$0xff]
  %v65 = vld [vmem:[%s7 + $0x18] sm:$0xff]
  %v66 = vld [vmem:[%s7 + $0x20] sm:$0xff]
  %68 = vset.pattern.permute.xlu0 0
  %69 = vperm.xlu0 %68, %v62
  %v70 = vpop.permute.xlu0 %69
  %73 = vset.pattern.permute.xlu0 0
  %74 = vperm.xlu0 %73, %v63
  %v75 = vpop.permute.xlu0 %74
  %78 = vset.pattern.permute.xlu0 0
  %79 = vperm.xlu0 %78, %v64
  %v80 = vpop.permute.xlu0 %79
  %83 = vset.pattern.permute.xlu0 0
  %84 = vperm.xlu0 %83, %v65
  %v85 = vpop.permute.xlu0 %84
  %88 = vset.pattern.permute.xlu0 0
  %89 = vperm.xlu0 %88, %v66
  %v90 = vpop.permute.xlu0 %89
  %v92 = vmul.f32 %v57, %v70
  %v93 = vmul.f32 %v58, %v75
  %v94 = vmul.f32 %v59, %v80
  %v95 = vmul.f32 %v60, %v85
  %v96 = vmul.f32 %v61, %v90
  %v97 = vadd.f32 %v92, %v93
  %v98 = vadd.f32 %v97, %v94
  %v99 = vadd.f32 %v98, %v95
  %v100 = vadd.f32 %v99, %v96
  %v101 = vrot.slane %v100, 4
  %v102 = vadd.f32 %v100, %v101
  %v103 = vrot.slane %v102, 2
  %v104 = vadd.f32 %v102, %v103
  %v105 = vrot.slane %v104, 1
  %v106 = vadd.f32 %v104, %v105
  %v107 = vld [vmem:[%s2] sm:$0xf]
  %v108 = vld [vmem:[%s2 + $0x4] sm:$0xf]
  %v109 = vld [vmem:[%s2 + $0x8] sm:$0xf]
  %v110 = vld [vmem:[%s2 + $0xc] sm:$0xf]
  %v111 = vld [vmem:[%s2 + $0x10] sm:$0xf]
  %v112 = vld [vmem:[%s2 + $0x14] sm:$0xf]
  %v113 = vld [vmem:[%s2 + $0x18] sm:$0xf]
  %v114 = vld [vmem:[%s2 + $0x1c] sm:$0xf]
  %v115 = vld [vmem:[%s3] sm:$0xf]
  %v116 = vld [vmem:[%s3 + $0x4] sm:$0xf]
  %v117 = vld [vmem:[%s3 + $0x8] sm:$0xf]
  %v118 = vld [vmem:[%s3 + $0xc] sm:$0xf]
  %v119 = vld [vmem:[%s3 + $0x10] sm:$0xf]
  %v120 = vld [vmem:[%s3 + $0x14] sm:$0xf]
  %v121 = vld [vmem:[%s3 + $0x18] sm:$0xf]
  %v122 = vld [vmem:[%s3 + $0x1c] sm:$0xf]
  %v131 = vunpack.c.l.b16 %v115
  %v132 = vunpack.c.l.b16 %v116
  %v133 = vunpack.c.l.b16 %v117
  %v134 = vunpack.c.l.b16 %v118
  %v135 = vunpack.c.l.b16 %v119
  %v136 = vunpack.c.l.b16 %v120
  %v137 = vunpack.c.l.b16 %v121
  %v138 = vunpack.c.l.b16 %v122
  %v139 = vpack.c.b16 %v132, %v131
  %v140 = vpack.c.b16 %v134, %v133
  %v141 = vpack.c.b16 %v136, %v135
  %v142 = vpack.c.b16 %v138, %v137
  %v148 = vunpack.c.l.b16 %v42
  %v149 = vunpack.c.l.b16 %v43
  %v150 = vunpack.c.l.b16 %v44
  %v151 = vunpack.c.l.b16 %v45
  %v152 = vunpack.c.l.b16 %v46
  %v153 = vpack.c.b16 %v149, %v148
  %v154 = vpack.c.b16 %v151, %v150
  %v155 = vpack.c.b16 %v152, %v152
  %vm158 = vcmask 326656
  %v160 = vsel %vm158, %v139, 0
  %v163 = vsel %vm158, %v140, 0
  %v166 = vsel %vm158, %v141, 0
  %v169 = vsel %vm158, %v142, 0
  %vm171 = vcmask 1043456
  %v173 = vsel %vm171, %v155, 0
  %175 = vmatprep.subr.bf16.mxu0 0
  %176 = vmatpush1.bf16.msra.mxu0 0
  %177 = vmatprep.subr.bf16.mxu0 0
  %178 = vmatpush1.bf16.msra.mxu0 0
  %179 = vmatprep.subr.bf16.mxu0 0
  %180 = vmatpush1.bf16.msra.mxu0 0
  %181 = vmatprep.subr.bf16.mxu0 0
  %182 = vmatpush1.bf16.msra.mxu0 0
  %183 = vmatprep.subr.bf16.mxu0 0
  %184 = vmatpush1.bf16.msra.mxu0 0
  %185 = vmatprep.subr.bf16.mxu0 0
  %186 = vmatpush1.bf16.msra.mxu0 %v173
  %187 = vmatprep.subr.bf16.mxu0 0
  %188 = vmatpush1.bf16.msra.mxu0 %v154
  %189 = vmatprep.subr.bf16.mxu0 0
  %190 = vmatpush1.bf16.msra.mxu0 %v153
  %191 = vmatprep.subr.bf16.mxu0 0
  %192 = vmatpush2.bf16.msra.mxu0 0
  %193 = vmatprep.subr.bf16.mxu0 0
  %194 = vmatpush2.bf16.msra.mxu0 0
  %195 = vmatprep.subr.bf16.mxu0 0
  %196 = vmatpush2.bf16.msra.mxu0 0
  %197 = vmatprep.subr.bf16.mxu0 0
  %198 = vmatpush2.bf16.msra.mxu0 0
  %199 = vmatprep.subr.bf16.mxu0 0
  %200 = vmatpush2.bf16.msra.mxu0 0
  %201 = vmatprep.subr.bf16.mxu0 0
  %202 = vmatpush2.bf16.msra.mxu0 0
  %203 = vmatprep.subr.bf16.mxu0 0
  %204 = vmatpush2.bf16.msra.mxu0 0
  %205 = vmatprep.subr.bf16.mxu0 0
  %206 = vmatpush2.bf16.msra.mxu0 0
  %207 = vmatprep.mubr.bf16.mxu0 0
  %208 = vmatmul.mubr.bf16.gmra.mxu0 %v160
  %v209 = vpop.f32.mrf.mxu0
  %v210 = vadd.f32 0.0, %v209
  %v211 = vpop.f32.mrf.mxu0
  %v212 = vpop.f32.mrf.mxu0
  %v213 = vadd.f32 0.0, %v212
  %v214 = vpop.f32.mrf.mxu0
  %215 = vmatprep.mubr.bf16.mxu0 0
  %216 = vmatmul.mubr.bf16.gmra.mxu0 %v163
  %v217 = vpop.f32.mrf.mxu0
  %v218 = vadd.f32 0.0, %v217
  %v219 = vpop.f32.mrf.mxu0
  %v220 = vpop.f32.mrf.mxu0
  %v221 = vadd.f32 0.0, %v220
  %v222 = vpop.f32.mrf.mxu0
  %223 = vmatprep.mubr.bf16.mxu0 0
  %224 = vmatmul.mubr.bf16.gmra.mxu0 %v166
  %v225 = vpop.f32.mrf.mxu0
  %v226 = vadd.f32 0.0, %v225
  %v227 = vpop.f32.mrf.mxu0
  %v228 = vpop.f32.mrf.mxu0
  %v229 = vadd.f32 0.0, %v228
  %v230 = vpop.f32.mrf.mxu0
  %231 = vmatprep.mubr.bf16.mxu0 0
  %232 = vmatmul.mubr.bf16.gmra.mxu0 %v169
  %v233 = vpop.f32.mrf.mxu0
  %v234 = vadd.f32 0.0, %v233
  %v235 = vpop.f32.mrf.mxu0
  %v236 = vpop.f32.mrf.mxu0
  %v237 = vadd.f32 0.0, %v236
  %v238 = vpop.f32.mrf.mxu0
  %239 = vdwg.mxu0
  %v248 = vunpack.c.l.b16 %v107
  %v249 = vunpack.c.l.b16 %v108
  %v250 = vunpack.c.l.b16 %v109
  %v251 = vunpack.c.l.b16 %v110
  %v252 = vunpack.c.l.b16 %v111
  %v253 = vunpack.c.l.b16 %v112
  %v254 = vunpack.c.l.b16 %v113
  %v255 = vunpack.c.l.b16 %v114
  %v256 = vpack.c.b16 %v249, %v248
  %v257 = vpack.c.b16 %v251, %v250
  %v258 = vpack.c.b16 %v253, %v252
  %v259 = vpack.c.b16 %v255, %v254
  %v265 = vunpack.c.l.b16 %v37
  %v266 = vunpack.c.l.b16 %v38
  %v267 = vunpack.c.l.b16 %v39
  %v268 = vunpack.c.l.b16 %v40
  %v269 = vunpack.c.l.b16 %v41
  %v270 = vpack.c.b16 %v266, %v265
  %v271 = vpack.c.b16 %v268, %v267
  %v272 = vpack.c.b16 %v269, %v269
  %v276 = vsel %vm158, %v256, 0
  %v279 = vsel %vm158, %v257, 0
  %v282 = vsel %vm158, %v258, 0
  %v285 = vsel %vm158, %v259, 0
  %v288 = vsel %vm171, %v272, 0
  %290 = vmatprep.subr.bf16.mxu0 0
  %291 = vmatpush1.bf16.msra.mxu0 0
  %292 = vmatprep.subr.bf16.mxu0 0
  %293 = vmatpush1.bf16.msra.mxu0 0
  %294 = vmatprep.subr.bf16.mxu0 0
  %295 = vmatpush1.bf16.msra.mxu0 0
  %296 = vmatprep.subr.bf16.mxu0 0
  %297 = vmatpush1.bf16.msra.mxu0 0
  %298 = vmatprep.subr.bf16.mxu0 0
  %299 = vmatpush1.bf16.msra.mxu0 0
  %300 = vmatprep.subr.bf16.mxu0 0
  %301 = vmatpush1.bf16.msra.mxu0 %v288
  %302 = vmatprep.subr.bf16.mxu0 0
  %303 = vmatpush1.bf16.msra.mxu0 %v271
  %304 = vmatprep.subr.bf16.mxu0 0
  %305 = vmatpush1.bf16.msra.mxu0 %v270
  %306 = vmatprep.subr.bf16.mxu0 0
  %307 = vmatpush2.bf16.msra.mxu0 0
  %308 = vmatprep.subr.bf16.mxu0 0
  %309 = vmatpush2.bf16.msra.mxu0 0
  %310 = vmatprep.subr.bf16.mxu0 0
  %311 = vmatpush2.bf16.msra.mxu0 0
  %312 = vmatprep.subr.bf16.mxu0 0
  %313 = vmatpush2.bf16.msra.mxu0 0
  %314 = vmatprep.subr.bf16.mxu0 0
  %315 = vmatpush2.bf16.msra.mxu0 0
  %316 = vmatprep.subr.bf16.mxu0 0
  %317 = vmatpush2.bf16.msra.mxu0 0
  %318 = vmatprep.subr.bf16.mxu0 0
  %319 = vmatpush2.bf16.msra.mxu0 0
  %320 = vmatprep.subr.bf16.mxu0 0
  %321 = vmatpush2.bf16.msra.mxu0 0
  %322 = vmatprep.mubr.bf16.mxu0 0
  %323 = vmatmul.mubr.bf16.gmra.mxu0 %v276
  %v324 = vpop.f32.mrf.mxu0
  %v325 = vadd.f32 %v210, %v324
  %v326 = vpop.f32.mrf.mxu0
  %v327 = vpop.f32.mrf.mxu0
  %v328 = vadd.f32 %v213, %v327
  %v329 = vpop.f32.mrf.mxu0
  %330 = vmatprep.mubr.bf16.mxu0 0
  %331 = vmatmul.mubr.bf16.gmra.mxu0 %v279
  %v332 = vpop.f32.mrf.mxu0
  %v333 = vadd.f32 %v218, %v332
  %v334 = vpop.f32.mrf.mxu0
  %v335 = vpop.f32.mrf.mxu0
  %v336 = vadd.f32 %v221, %v335
  %v337 = vpop.f32.mrf.mxu0
  %338 = vmatprep.mubr.bf16.mxu0 0
  %339 = vmatmul.mubr.bf16.gmra.mxu0 %v282
  %v340 = vpop.f32.mrf.mxu0
  %v341 = vadd.f32 %v226, %v340
  %v342 = vpop.f32.mrf.mxu0
  %v343 = vpop.f32.mrf.mxu0
  %v344 = vadd.f32 %v229, %v343
  %v345 = vpop.f32.mrf.mxu0
  %346 = vmatprep.mubr.bf16.mxu0 0
  %347 = vmatmul.mubr.bf16.gmra.mxu0 %v285
  %v348 = vpop.f32.mrf.mxu0
  %v349 = vadd.f32 %v234, %v348
  %v350 = vpop.f32.mrf.mxu0
  %v351 = vpop.f32.mrf.mxu0
  %v352 = vadd.f32 %v237, %v351
  %v353 = vpop.f32.mrf.mxu0
  %354 = vdwg.mxu0
  %v355 = vld [vmem:[%s4] sm:$0xff]
  %v356 = vld [vmem:[%s4 + $0x8] sm:$0xff]
  %v357 = vld [vmem:[%s4 + $0x10] sm:$0xff]
  %v358 = vld [vmem:[%s4 + $0x18] sm:$0xff]
  %v359 = vld [vmem:[%s4 + $0x20] sm:$0xff]
  %v360 = vld [vmem:[%s4 + $0x28] sm:$0xff]
  %v361 = vld [vmem:[%s4 + $0x30] sm:$0xff]
  %v362 = vld [vmem:[%s4 + $0x38] sm:$0xff]
  %364 = vset.pattern.permute.xlu0 0
  %365 = vperm.xlu0 %364, %v355
  %v366 = vpop.permute.xlu0 %365
  %369 = vset.pattern.permute.xlu0 0
  %370 = vperm.xlu0 %369, %v356
  %v371 = vpop.permute.xlu0 %370
  %374 = vset.pattern.permute.xlu0 0
  %375 = vperm.xlu0 %374, %v357
  %v376 = vpop.permute.xlu0 %375
  %379 = vset.pattern.permute.xlu0 0
  %380 = vperm.xlu0 %379, %v358
  %v381 = vpop.permute.xlu0 %380
  %384 = vset.pattern.permute.xlu0 0
  %385 = vperm.xlu0 %384, %v359
  %v386 = vpop.permute.xlu0 %385
  %389 = vset.pattern.permute.xlu0 0
  %390 = vperm.xlu0 %389, %v360
  %v391 = vpop.permute.xlu0 %390
  %394 = vset.pattern.permute.xlu0 0
  %395 = vperm.xlu0 %394, %v361
  %v396 = vpop.permute.xlu0 %395
  %399 = vset.pattern.permute.xlu0 0
  %400 = vperm.xlu0 %399, %v362
  %v401 = vpop.permute.xlu0 %400
  %v403 = vadd.f32 %v325, %v366
  %v404 = vadd.f32 %v328, %v371
  %v405 = vadd.f32 %v333, %v376
  %v406 = vadd.f32 %v336, %v381
  %v407 = vadd.f32 %v341, %v386
  %v408 = vadd.f32 %v344, %v391
  %v409 = vadd.f32 %v349, %v396
  %v410 = vadd.f32 %v352, %v401
  %v411 = vmax.f32 %v403, 0.0
  %v412 = vmax.f32 %v404, 0.0
  %v413 = vmax.f32 %v405, 0.0
  %v414 = vmax.f32 %v406, 0.0
  %v415 = vmax.f32 %v407, 0.0
  %v416 = vmax.f32 %v408, 0.0
  %v417 = vmax.f32 %v409, 0.0
  %v418 = vmax.f32 %v410, 0.0
  %v419 = vld [vmem:[%s5] sm:$0xf]
  %v420 = vld [vmem:[%s5 + $0x4] sm:$0xf]
  %v421 = vld [vmem:[%s5 + $0x8] sm:$0xf]
  %v422 = vld [vmem:[%s5 + $0xc] sm:$0xf]
  %v423 = vpack.c.bf16 %v412, %v411
  %v424 = vpack.c.bf16 %v414, %v413
  %v425 = vpack.c.bf16 %v416, %v415
  %v426 = vpack.c.bf16 %v418, %v417
  %v427 = vld [vmem:[%s6] sm:$0xff]
  %v428 = vld [vmem:[%s6 + $0x8] sm:$0xff]
  %v429 = vld [vmem:[%s6 + $0x10] sm:$0xff]
  %v430 = vld [vmem:[%s6 + $0x18] sm:$0xff]
  %432 = vset.pattern.permute.xlu0 0
  %433 = vperm.xlu0 %432, %v427
  %v434 = vpop.permute.xlu0 %433
  %437 = vset.pattern.permute.xlu0 0
  %438 = vperm.xlu0 %437, %v428
  %v439 = vpop.permute.xlu0 %438
  %442 = vset.pattern.permute.xlu0 0
  %443 = vperm.xlu0 %442, %v429
  %v444 = vpop.permute.xlu0 %443
  %447 = vset.pattern.permute.xlu0 0
  %448 = vperm.xlu0 %447, %v430
  %v449 = vpop.permute.xlu0 %448
  %v455 = vunpack.c.l.b16 %v419
  %v456 = vunpack.c.l.b16 %v420
  %v457 = vunpack.c.l.b16 %v421
  %v458 = vunpack.c.l.b16 %v422
  %v459 = vpack.c.b16 %v456, %v455
  %v460 = vpack.c.b16 %v458, %v457
  %vm461 = vcmask 523264
  %v463 = vsel %vm461, %v459, 0
  %v466 = vsel %vm461, %v460, 0
  %468 = vmatprep.subr.bf16.mxu0 0
  %469 = vmatpush1.bf16.msra.mxu0 0
  %470 = vmatprep.subr.bf16.mxu0 0
  %471 = vmatpush1.bf16.msra.mxu0 0
  %472 = vmatprep.subr.bf16.mxu0 0
  %473 = vmatpush1.bf16.msra.mxu0 0
  %474 = vmatprep.subr.bf16.mxu0 0
  %475 = vmatpush1.bf16.msra.mxu0 0
  %476 = vmatprep.subr.bf16.mxu0 0
  %477 = vmatpush1.bf16.msra.mxu0 %v426
  %478 = vmatprep.subr.bf16.mxu0 0
  %479 = vmatpush1.bf16.msra.mxu0 %v425
  %480 = vmatprep.subr.bf16.mxu0 0
  %481 = vmatpush1.bf16.msra.mxu0 %v424
  %482 = vmatprep.subr.bf16.mxu0 0
  %483 = vmatpush1.bf16.msra.mxu0 %v423
  %484 = vmatprep.subr.bf16.mxu0 0
  %485 = vmatpush2.bf16.msra.mxu0 0
  %486 = vmatprep.subr.bf16.mxu0 0
  %487 = vmatpush2.bf16.msra.mxu0 0
  %488 = vmatprep.subr.bf16.mxu0 0
  %489 = vmatpush2.bf16.msra.mxu0 0
  %490 = vmatprep.subr.bf16.mxu0 0
  %491 = vmatpush2.bf16.msra.mxu0 0
  %492 = vmatprep.subr.bf16.mxu0 0
  %493 = vmatpush2.bf16.msra.mxu0 0
  %494 = vmatprep.subr.bf16.mxu0 0
  %495 = vmatpush2.bf16.msra.mxu0 0
  %496 = vmatprep.subr.bf16.mxu0 0
  %497 = vmatpush2.bf16.msra.mxu0 0
  %498 = vmatprep.subr.bf16.mxu0 0
  %499 = vmatpush2.bf16.msra.mxu0 0
  %500 = vmatprep.mubr.bf16.mxu0 0
  %501 = vmatmul.mubr.bf16.gmra.mxu0 %v463
  %v502 = vpop.f32.mrf.mxu0
  %v503 = vadd.f32 %v434, %v502
  %v504 = vpop.f32.mrf.mxu0
  %v505 = vpop.f32.mrf.mxu0
  %v506 = vadd.f32 %v439, %v505
  %v507 = vpop.f32.mrf.mxu0
  %508 = vmatprep.mubr.bf16.mxu0 0
  %509 = vmatmul.mubr.bf16.gmra.mxu0 %v466
  %v510 = vpop.f32.mrf.mxu0
  %v511 = vadd.f32 %v444, %v510
  %v512 = vpop.f32.mrf.mxu0
  %v513 = vpop.f32.mrf.mxu0
  %v514 = vadd.f32 %v449, %v513
  %v515 = vpop.f32.mrf.mxu0
  %516 = vdwg.mxu0
  %v517 = vmax.f32 %v503, 0.0
  %v518 = vmax.f32 %v506, 0.0
  %v519 = vmax.f32 %v511, 0.0
  %v520 = vmax.f32 %v514, 0.0
  %v521 = vld [vmem:[%s8] sm:$0xff]
  %v522 = vld [vmem:[%s8 + $0x8] sm:$0xff]
  %v523 = vld [vmem:[%s8 + $0x10] sm:$0xff]
  %v524 = vld [vmem:[%s8 + $0x18] sm:$0xff]
  %526 = vset.pattern.permute.xlu0 0
  %527 = vperm.xlu0 %526, %v521
  %v528 = vpop.permute.xlu0 %527
  %531 = vset.pattern.permute.xlu0 0
  %532 = vperm.xlu0 %531, %v522
  %v533 = vpop.permute.xlu0 %532
  %536 = vset.pattern.permute.xlu0 0
  %537 = vperm.xlu0 %536, %v523
  %v538 = vpop.permute.xlu0 %537
  %541 = vset.pattern.permute.xlu0 0
  %542 = vperm.xlu0 %541, %v524
  %v543 = vpop.permute.xlu0 %542
  %v545 = vmul.f32 %v517, %v528
  %v546 = vmul.f32 %v518, %v533
  %v547 = vmul.f32 %v519, %v538
  %v548 = vmul.f32 %v520, %v543
  %v549 = vadd.f32 %v545, %v546
  %v550 = vadd.f32 %v549, %v547
  %v551 = vadd.f32 %v550, %v548
  %v552 = vrot.slane %v551, 4
  %v553 = vadd.f32 %v551, %v552
  %v554 = vrot.slane %v553, 2
  %v555 = vadd.f32 %v553, %v554
  %v556 = vrot.slane %v555, 1
  %v557 = vadd.f32 %v555, %v556
  %v558 = vadd.f32 %v106, %v557
  %s559 = sld [smem:[#allocation2]]
  %v560 = vstv %s559
  %v561 = vadd.f32 %v558, %v560
  %v562 = vsub.f32 0.0, %v561
  %v563 = vmul.f32 %v562, 1.442695
  %v564 = vpow.pop %v563
  %v565 = vadd.f32 %v564, 1.0
  %v566 = vrcp.pop %v565
  %v567 = vmul.f32 1.0, %v566
  %568 = vst [vmem:[%s10] sm:$0x1] %v567
  // Predicated region
  $region42: #{ncf_forward.1} parent=0 // pred_check
    _
  $region43: #{ncf_forward.1} parent=0 // pred_check_branch
    %570 = sbr.rel (0) target = $region45
  $region44: #{ncf_forward.1} parent=0 // pred_region
    _
  $region45: #{ncf_forward.1} parent=0 // pred_fallthru
    _
  // Predicated region
  $region46: #{ncf_forward.1} parent=0 // pred_check
    _
  $region47: #{ncf_forward.1} parent=0 // pred_check_branch
    %572 = sbr.rel (0) target = $region49
  $region48: #{ncf_forward.1} parent=0 // pred_region
    _
  $region49: #{ncf_forward.1} parent=0 // pred_fallthru
    _

</llo_original>
